<compile_context>
chip_gen: v7x
topology: tpu7x:2x2x1
jax: 0.10.0
libtpu: 0.0.40
codegen_flags: <defaults>
</compile_context>

<pallas_src>
import functools
import math

import jax
import jax.numpy as jnp
from jax.experimental import pallas as pl
from jax.experimental.pallas import tpu as pltpu


def _round_up(x, m):
    return (x + m - 1) // m * m


def _vmem_capacity_bytes():
    try:
        return int(pltpu.get_tpu_info().vmem_capacity_bytes)
    except Exception:
        return 64 * 1024 * 1024          # conservative default (v7x per-core VMEM)


def _compiler_params(semantics, vmem_bytes_needed, vmem_cap):
    limit = max(int(vmem_bytes_needed) + (8 << 20), 32 << 20)
    limit = min(limit, int(vmem_cap * 0.9))
    return pltpu.CompilerParams(dimension_semantics=semantics,
                                vmem_limit_bytes=int(limit))


# -----------------------------------------------------------------------------
# Kernel 1: conv-as-matmul + bias + SiLU + masked spatial max
#   grid = (row blocks over b*T, K blocks over the im2col contraction dim)
# -----------------------------------------------------------------------------
def _conv_silu_max_kernel(p_ref, cw_ref, cb_ref, o_ref, acc_ref, *,
                          hw, weight_resident):
    k = pl.program_id(1)

    @pl.when(k == 0)
    def _():
        acc_ref[...] = jnp.zeros_like(acc_ref)

    k_t = p_ref.shape[1]
    if weight_resident:
        # Full conv weight is VMEM-resident (constant block index): slice this
        # step's K tile in-kernel instead of re-DMA'ing it per row block.
        start = pl.multiple_of(k * k_t, k_t)
        w_tile = cw_ref[pl.ds(start, k_t), :]
    else:
        w_tile = cw_ref[...]

    # Conv3d-as-matmul partial product for this K tile (f32 MXU accumulation).
    acc_ref[...] += jnp.dot(p_ref[...], w_tile,
                            preferred_element_type=jnp.float32)

    @pl.when(k == pl.num_programs(1) - 1)
    def _():
        rows, dp = acc_ref.shape
        tbt = o_ref.shape[0]
        hwp = rows // tbt
        y = acc_ref[...] + cb_ref[...]                 # conv bias (f32)
        y = y * jax.nn.sigmoid(y)                      # SiLU (VPU/EUP, f32)
        y = y.reshape(tbt, hwp, dp)
        sp = jax.lax.broadcasted_iota(jnp.int32, (tbt, hwp, dp), 1)
        y = jnp.where(sp < hw, y, jnp.finfo(jnp.float32).min)   # mask spatial pad
        o_ref[...] = jnp.max(y, axis=1).astype(o_ref.dtype)     # spatial max (XLU)


# -----------------------------------------------------------------------------
# Kernel 2: readout MLP  Linear -> GELU -> Linear
#   grid = (row blocks over b*T, hidden blocks over the MLP hidden dim)
# -----------------------------------------------------------------------------
def _readout_mlp_kernel(x_ref, w1_ref, b1_ref, w2_ref, b2_ref, o_ref, acc_ref, *,
                        gelu_approximate, mm_dtype):
    j = pl.program_id(1)

    @pl.when(j == 0)
    def _():
        acc_ref[...] = jnp.zeros_like(acc_ref)

    h = jnp.dot(x_ref[...].astype(mm_dtype), w1_ref[...],
                preferred_element_type=jnp.float32) + b1_ref[...]
    h = jax.nn.gelu(h, approximate=gelu_approximate)           # f32 elementwise
    acc_ref[...] += jnp.dot(h.astype(mm_dtype), w2_ref[...],
                            preferred_element_type=jnp.float32)

    @pl.when(j == pl.num_programs(1) - 1)
    def _():
        o_ref[...] = (acc_ref[...] + b2_ref[...]).astype(o_ref.dtype)


# -----------------------------------------------------------------------------
# Tile pickers (full VMEM accounting under a generation-aware budget)
# -----------------------------------------------------------------------------
def _pick_k_tiles(kp, cap=2048):
    """Divisors of kp that are multiples of 128; prefer multiples of 256."""
    cands = sorted(c for c in range(128, min(kp, cap) + 1, 128) if kp % c == 0)
    pref = [c for c in cands if c % 256 == 0]
    return cands, (pref or cands)[-1]


def _pick_conv_tiles(bt, hwp, dp, kp, mm_itemsize, budget):
    cands, k_t = _pick_k_tiles(kp)
    row_cap = max(8, (4096 // hwp) // 8 * 8)      # keep M per step <= ~4096 rows
    min_tbt = min(8, bt)

    def max_tbt(k_tile, resident):
        w_b = 2 * (kp if resident else k_tile) * dp * mm_itemsize   # 2 pipeline bufs
        fixed = w_b + 2 * 8 * dp * 4                                # conv bias blocks
        per_row = hwp * (2 * k_tile * mm_itemsize + dp * 4) + 2 * dp * 4
        avail = budget - fixed
        if avail < per_row * min_tbt:
            return 0
        tbt = min(avail // per_row, row_cap)
        if tbt >= bt:
            return bt
        return (tbt // 8) * 8

    tbt = max_tbt(k_t, True)
    if tbt >= min_tbt:
        return tbt, k_t, True
    # Conv weight too large to hold resident: fall back to K-blocked weight and
    # shrink the K tile until the working set fits.
    for k_try in reversed(cands):
        if k_try > k_t:
            continue
        tbt = max_tbt(k_try, False)
        if tbt >= min_tbt:
            return tbt, k_try, False
    return min_tbt, cands[0], False               # last resort; limit still guards


def _pick_mlp_tiles(bt, dp, mm_itemsize, out_itemsize, budget):
    _, h_t = _pick_k_tiles(dp, cap=1024)

    def max_tm(h_tile):
        w_b = 2 * 2 * dp * h_tile * mm_itemsize          # w1 + w2, 2 buffers each
        fixed = w_b + 2 * 8 * (h_tile + dp) * 4          # bias blocks
        per_row = 2 * dp * 4 + dp * 4 + 2 * dp * out_itemsize
        avail = budget - fixed
        if avail < per_row * min(8, bt):
            return 0
        tm = min(avail // per_row, 1024)
        if tm >= bt:
            return bt
        return (tm // 8) * 8

    tm = max_tm(h_t)
    while tm < min(8, bt) and h_t > 128:
        h_t = 128 if (h_t // 2) % 128 else h_t // 2
        tm = max_tm(h_t)
    tm = max(tm, min(8, bt))
    return tm, h_t


# -----------------------------------------------------------------------------
# Driver: pad, call the two Pallas kernels, unpad
# -----------------------------------------------------------------------------
def _stc_pallas_forward(patches3, conv_w_flat, conv_b, w1, b1, w2, b2, *,
                        out_dtype, gelu_approximate, mm_dtype):
    """patches3: [b*T, H*W, kT*kH*kW*Cin] (already in mm_dtype) -> [b*T, Cout]."""
    bt, hw, kdim = patches3.shape
    d_out = conv_w_flat.shape[1]
    mm_itemsize = jnp.dtype(mm_dtype).itemsize

    dp = _round_up(d_out, 128)       # lane-dense channel dim (MXU columns / stores)
    hwp = _round_up(hw, 8)           # sublane-aligned spatial extent
    kp = _round_up(kdim, 128)        # lane-dense contraction dim

    vmem_cap = _vmem_capacity_bytes()
    budget = int(vmem_cap * 0.4)     # per-core working-set target (v7x megacore safe)

    # ----------------- kernel 1: conv + bias + SiLU + spatial max -----------------
    tbt, k_t, w_resident = _pick_conv_tiles(bt, hwp, dp, kp, mm_itemsize, budget)
    btp = _round_up(bt, tbt)

    # Zero padding everywhere (spatial pad is masked in-kernel before the max).
    p = jnp.pad(patches3, ((0, btp - bt), (0, hwp - hw), (0, kp - kdim)))
    p = p.reshape(btp * hwp, kp).astype(mm_dtype)

    cw = jnp.pad(conv_w_flat, ((0, kp - kdim), (0, dp - d_out))).astype(mm_dtype)
    cb = jnp.pad(conv_b, (0, dp - d_out)).reshape(1, dp).astype(jnp.float32)

    if w_resident:
        cw_spec = pl.BlockSpec((kp, dp), lambda i, k: (0, 0))     # read once, resident
    else:
        cw_spec = pl.BlockSpec((k_t, dp), lambda i, k: (k, 0))

    conv_bytes = (2 * tbt * hwp * k_t * mm_itemsize
                  + 2 * (kp if w_resident else k_t) * dp * mm_itemsize
                  + tbt * hwp * dp * 4 + 2 * tbt * dp * 4 + 2 * 8 * dp * 4)

    kern1 = functools.partial(_conv_silu_max_kernel, hw=hw,
                              weight_resident=w_resident)
    pooled = pl.pallas_call(
        kern1,
        out_shape=jax.ShapeDtypeStruct((btp, dp), jnp.float32),
        grid_spec=pltpu.PrefetchScalarGridSpec(
            num_scalar_prefetch=0,
            grid=(btp // tbt, kp // k_t),
            in_specs=[
                pl.BlockSpec((tbt * hwp, k_t), lambda i, k: (i, k)),   # patches
                cw_spec,                                               # conv weight
                pl.BlockSpec((1, dp), lambda i, k: (0, 0)),            # conv bias
            ],
            out_specs=pl.BlockSpec((tbt, dp), lambda i, k: (i, 0)),
            scratch_shapes=[pltpu.VMEM((tbt * hwp, dp), jnp.float32)],
        ),
        compiler_params=_compiler_params(("parallel", "arbitrary"),
                                         conv_bytes, vmem_cap),
    )(p, cw, cb)

    # ----------------- kernel 2: readout MLP (Linear -> GELU -> Linear) -----------
    out_itemsize = jnp.dtype(out_dtype).itemsize
    tm2, h_t = _pick_mlp_tiles(bt, dp, mm_itemsize, out_itemsize, budget)
    btp2 = _round_up(bt, tm2)
    x2 = pooled[:bt]
    if btp2 > bt:
        x2 = jnp.pad(x2, ((0, btp2 - bt), (0, 0)))

    w1p = jnp.pad(w1, ((0, dp - d_out), (0, dp - d_out))).astype(mm_dtype)
    b1p = jnp.pad(b1, (0, dp - d_out)).reshape(1, dp).astype(jnp.float32)
    w2p = jnp.pad(w2, ((0, dp - d_out), (0, dp - d_out))).astype(mm_dtype)
    b2p = jnp.pad(b2, (0, dp - d_out)).reshape(1, dp).astype(jnp.float32)

    mlp_bytes = (2 * tm2 * dp * 4 + 2 * 2 * dp * h_t * mm_itemsize
                 + tm2 * dp * 4 + 2 * tm2 * dp * out_itemsize
                 + 2 * 8 * (h_t + dp) * 4)

    kern2 = functools.partial(_readout_mlp_kernel,
                              gelu_approximate=gelu_approximate,
                              mm_dtype=jnp.dtype(mm_dtype))
    out = pl.pallas_call(
        kern2,
        out_shape=jax.ShapeDtypeStruct((btp2, dp), out_dtype),
        grid_spec=pltpu.PrefetchScalarGridSpec(
            num_scalar_prefetch=0,
            grid=(btp2 // tm2, dp // h_t),
            in_specs=[
                pl.BlockSpec((tm2, dp), lambda i, j: (i, 0)),          # pooled
                pl.BlockSpec((dp, h_t), lambda i, j: (0, j)),          # w1
                pl.BlockSpec((1, h_t), lambda i, j: (0, j)),           # b1
                pl.BlockSpec((h_t, dp), lambda i, j: (j, 0)),          # w2
                pl.BlockSpec((1, dp), lambda i, j: (0, 0)),            # b2
            ],
            out_specs=pl.BlockSpec((tm2, dp), lambda i, j: (i, 0)),
            scratch_shapes=[pltpu.VMEM((tm2, dp), jnp.float32)],
        ),
        compiler_params=_compiler_params(("parallel", "arbitrary"),
                                         mlp_bytes, vmem_cap),
    )(x2, w1p, b1p, w2p, b2p)
    return out[:bt, :d_out]


# -----------------------------------------------------------------------------
# STCConnector forward (depth = 0 => s1 = s2 = Identity; mlp_depth = 2)
# -----------------------------------------------------------------------------
def stc_connector_forward(params, x, downsample=(2, 2, 2), gelu_approximate=False,
                          mxu_dtype=jnp.bfloat16):
    """Input x: [b, t, h, w, d] or [b, t, l, d] (channels last). Output: [b, new_t, d]."""
    # TODO(synk): timm RegStage / LayerNorm2d (s1, s2 used when depth != 0) are external
    # modules whose definition is not part of the given source; the depth=0 Identity path
    # is implemented exactly (requires encoder_hidden_size == hidden_size).
    if x.ndim == 4:
        b, t, l, d = x.shape
        hw = int(round(l ** 0.5))
        x = x.reshape(b, t, hw, hw, d)
    b, t, h, w, d = x.shape
    sT, sH, sW = downsample              # Conv3d: kernel == stride == downsample, padding=1

    T = (t + 2 - sT) // sT + 1
    H = (h + 2 - sH) // sH + 1
    W = (w + 2 - sW) // sW + 1

    out_dtype = x.dtype
    mm_dtype = jnp.dtype(mxu_dtype) if mxu_dtype is not None else jnp.dtype(x.dtype)

    # im2col for a kernel==stride conv with padding=1: pad, crop, reshape, transpose,
    # materialised ONCE in the MXU dtype (bf16 by default) to halve its HBM footprint.
    # Tap order is (kt, kh, kw) major with Cin innermost, matching the flattened weight.
    # TODO(synk): folding this tap gather into the kernel (kernel==stride makes it a pure
    # permutation) needs multi-dim strided DMA / per-tap index_maps; not done here.
    xc = x.astype(mm_dtype)
    xp = jnp.pad(xc, ((0, 0), (1, 1), (1, 1), (1, 1), (0, 0)))
    xp = xp[:, :sT * T, :sH * H, :sW * W, :]
    xp = xp.reshape(b, T, sT, H, sH, W, sW, d)
    patches = xp.transpose(0, 1, 3, 5, 2, 4, 6, 7).reshape(b * T, H * W, sT * sH * sW * d)

    w_flat = params["conv_w"].reshape(-1, params["conv_w"].shape[-1])    # [taps*Cin, Cout]
    out = _stc_pallas_forward(patches, w_flat, params["conv_b"],
                              params["w1"], params["b1"], params["w2"], params["b2"],
                              out_dtype=out_dtype, gelu_approximate=gelu_approximate,
                              mm_dtype=mm_dtype)                          # [(b T), D]
    return out.reshape(b, T, -1)


# -----------------------------------------------------------------------------
# Pure-JAX reference (full-precision) for the self-check
# -----------------------------------------------------------------------------
def reference_forward(params, x, downsample=(2, 2, 2), gelu_approximate=False):
    if x.ndim == 4:
        b, t, l, d = x.shape
        hw = int(round(l ** 0.5))
        x = x.reshape(b, t, hw, hw, d)
    y = jax.lax.conv_general_dilated(
        x, params["conv_w"], window_strides=downsample, padding=[(1, 1)] * 3,
        dimension_numbers=("NDHWC", "DHWIO", "NDHWC"),
        precision=jax.lax.Precision.HIGHEST)
    y = y + params["conv_b"]
    y = y * jax.nn.sigmoid(y)
    y = jnp.max(y, axis=(2, 3))                                          # [b, T, D]
    h = jnp.dot(y, params["w1"], precision=jax.lax.Precision.HIGHEST) + params["b1"]
    h = jax.nn.gelu(h, approximate=gelu_approximate)
    return jnp.dot(h, params["w2"], precision=jax.lax.Precision.HIGHEST) + params["b2"]


# -----------------------------------------------------------------------------
# Deterministic parameter init (synthetic; no checkpoint load)
# -----------------------------------------------------------------------------
def init_params(key, c, downsample=(2, 2, 2)):
    kT, kH, kW = downsample
    ks = jax.random.split(key, 6)
    fan_conv = kT * kH * kW * c
    return {
        "conv_w": jax.random.normal(ks[0], (kT, kH, kW, c, c), jnp.float32) / math.sqrt(fan_conv),
        "conv_b": 0.02 * jax.random.normal(ks[1], (c,), jnp.float32),
        "w1": jax.random.normal(ks[2], (c, c), jnp.float32) / math.sqrt(c),
        "b1": 0.02 * jax.random.normal(ks[3], (c,), jnp.float32),
        "w2": jax.random.normal(ks[4], (c, c), jnp.float32) / math.sqrt(c),
        "b2": 0.02 * jax.random.normal(ks[5], (c,), jnp.float32),
    }


if __name__ == "__main__":
    key = jax.random.PRNGKey(0)
    pkey, xkey = jax.random.split(key)
    C = 32  # encoder_hidden_size == hidden_size (depth=0 config)
    params = init_params(pkey, C)
    x = jax.random.normal(xkey, (2, 4, 8, 8, C), jnp.float32)  # [b, t, h, w, d]

    fwd = jax.jit(stc_connector_forward,
                  static_argnames=("downsample", "gelu_approximate", "mxu_dtype"))

    # Exact (erf) GELU matches torch nn.GELU() default.  If it fails to lower on this
    # Mosaic build, fall back LOUDLY to the tanh approximation (and compare against a
    # matching reference so the check still validates the kernel).
    approx = False
    try:
        out = jax.block_until_ready(fwd(params, x, gelu_approximate=False))
    except Exception as e:
        print(f"WARNING: exact-erf GELU failed to lower "
              f"({type(e).__name__}); falling back to tanh-approximate GELU")
        approx = True
        out = jax.block_until_ready(fwd(params, x, gelu_approximate=True))

    ref = reference_forward(params, x, gelu_approximate=approx)
    assert out.shape == (2, 3, C), out.shape

    # Default path: bf16 MXU operands with f32 accumulation (loose sanity bound).
    err_bf16 = float(jnp.max(jnp.abs(out - ref)))
    assert err_bf16 < 1e-1, f"bf16 max abs err {err_bf16}"

    # f32 MXU operands: tight bound validates the fused structure exactly.
    out_f32 = jax.block_until_ready(
        fwd(params, x, gelu_approximate=approx, mxu_dtype=jnp.float32))
    err_f32 = float(jnp.max(jnp.abs(out_f32 - ref)))
    assert err_f32 < 1e-4, f"f32 max abs err {err_f32}"

    # Flattened [b, t, l, d] input path must match the 5-D path bit-for-bit.
    out4 = jax.block_until_ready(
        fwd(params, x.reshape(2, 4, 64, C), gelu_approximate=approx))
    assert float(jnp.max(jnp.abs(out4 - out))) == 0.0

    print("KERNEL_OK")
</pallas_src>

<mosaic_0001>
module attributes {stable_mosaic.version = 11 : i64} {
  func.func @_conv_silu_max_kernel(%arg0: i32, %arg1: i32, %arg2: memref<192x256xbf16, #tpu.memory_space<vmem>>, %arg3: memref<256x128xbf16, #tpu.memory_space<vmem>>, %arg4: memref<1x128xf32, #tpu.memory_space<vmem>>, %arg5: memref<6x128xf32, #tpu.memory_space<vmem>>, %arg6: memref<192x128xf32, #tpu.memory_space<vmem>>) attributes {dimension_semantics = [#tpu.dimension_semantics<parallel>, #tpu.dimension_semantics<arbitrary>], iteration_bounds = array<i64: 1, 1>, scalar_prefetch = 0 : i64, scratch_operands = 1 : i64, tpu.core_type = #tpu.core_type<tc>, window_params = [{transform_indices = @transform_0, window_bounds = array<i64: 192, 256>}, {pipeline_mode = #tpu.pipeline_mode<synchronous>, transform_indices = @transform_1, window_bounds = array<i64: 256, 128>}, {pipeline_mode = #tpu.pipeline_mode<synchronous>, transform_indices = @transform_2, window_bounds = array<i64: 1, 128>}, {transform_indices = @transform_3, window_bounds = array<i64: 6, 128>}]} {
    %c0_i32 = arith.constant 0 : i32
    %0 = arith.cmpi eq, %arg1, %c0_i32 : i32
    %1 = arith.extui %0 : i1 to i32
    %c0_i32_0 = arith.constant 0 : i32
    %2 = arith.cmpi ne, %1, %c0_i32_0 : i32
    scf.if %2 {
      %cst_9 = arith.constant 0.000000e+00 : f32
      %15 = vector.broadcast %cst_9 : f32 to vector<192x128xf32>
      %c0_10 = arith.constant 0 : index
      %c0_11 = arith.constant 0 : index
      %16 = vector.load %arg6[%c0_10, %c0_11] : memref<192x128xf32, #tpu.memory_space<vmem>>, vector<192x128xf32>
      tpu.vector_store %arg6[%c0_10, %c0_11], %15 {strides = array<i32>} : memref<192x128xf32, #tpu.memory_space<vmem>>, vector<192x128xf32>,
    } else {
    }
    %c256_i32 = arith.constant 256 : i32
    %3 = arith.muli %arg1, %c256_i32 : i32
    %4 = tpu.assume_multiple %3, 256 : i32
    %5 = arith.index_cast %4 : i32 to index
    %c0 = arith.constant 0 : index
    %6 = vector.load %arg3[%5, %c0] : memref<256x128xbf16, #tpu.memory_space<vmem>>, vector<256x128xbf16>
    %c0_1 = arith.constant 0 : index
    %c0_2 = arith.constant 0 : index
    %7 = vector.load %arg6[%c0_1, %c0_2] : memref<192x128xf32, #tpu.memory_space<vmem>>, vector<192x128xf32>
    %c0_3 = arith.constant 0 : index
    %c0_4 = arith.constant 0 : index
    %8 = vector.load %arg2[%c0_3, %c0_4] : memref<192x256xbf16, #tpu.memory_space<vmem>>, vector<192x256xbf16>
    %cst = arith.constant dense<0.000000e+00> : vector<192x128xf32>
    %9 = tpu.matmul %8, %6, %cst {dimension_numbers = #tpu.dot_dimension_numbers<[1], [0], [0], [1], [0, 0, 1, 1], [], []>} : vector<192x256xbf16>, vector<256x128xbf16>, vector<192x128xf32> -> vector<192x128xf32>
    %10 = arith.addf %7, %9 : vector<192x128xf32>
    %c0_5 = arith.constant 0 : index
    %c0_6 = arith.constant 0 : index
    %11 = vector.load %arg6[%c0_5, %c0_6] : memref<192x128xf32, #tpu.memory_space<vmem>>, vector<192x128xf32>
    tpu.vector_store %arg6[%c0_5, %c0_6], %10 {strides = array<i32>} : memref<192x128xf32, #tpu.memory_space<vmem>>, vector<192x128xf32>,
    %c0_i32_7 = arith.constant 0 : i32
    %12 = arith.cmpi eq, %arg1, %c0_i32_7 : i32
    %13 = arith.extui %12 : i1 to i32
    %c0_i32_8 = arith.constant 0 : i32
    %14 = arith.cmpi ne, %13, %c0_i32_8 : i32
    scf.if %14 {
      %c0_9 = arith.constant 0 : index
      %c0_10 = arith.constant 0 : index
      %15 = vector.load %arg6[%c0_9, %c0_10] : memref<192x128xf32, #tpu.memory_space<vmem>>, vector<192x128xf32>
      %c0_11 = arith.constant 0 : index
      %c0_12 = arith.constant 0 : index
      %16 = vector.load %arg4[%c0_11, %c0_12] : memref<1x128xf32, #tpu.memory_space<vmem>>, vector<1x128xf32>
      %17 = vector.broadcast %16 : vector<1x128xf32> to vector<192x128xf32>
      %18 = arith.addf %15, %17 : vector<192x128xf32>
      %19 = arith.negf %18 : vector<192x128xf32>
      %20 = math.exp %19 : vector<192x128xf32>
      %cst_13 = arith.constant 1.000000e+00 : f32
      %21 = vector.broadcast %cst_13 : f32 to vector<192x128xf32>
      %22 = arith.addf %21, %20 : vector<192x128xf32>
      %23 = arith.divf %21, %22 : vector<192x128xf32>
      %24 = arith.mulf %18, %23 : vector<192x128xf32>
      %25 = vector.shape_cast %24 : vector<192x128xf32> to vector<6x32x128xf32>
      %26 = tpu.iota {dimensions = array<i32: 1>} : vector<6x32x128xi32>
      %c25_i32 = arith.constant 25 : i32
      %27 = vector.broadcast %c25_i32 : i32 to vector<6x32x128xi32>
      %28 = arith.cmpi slt, %26, %27 : vector<6x32x128xi32>
      %cst_14 = arith.constant -3.40282347E+38 : f32
      %29 = vector.broadcast %cst_14 : f32 to vector<6x32x128xf32>
      %30 = arith.select %28, %25, %29 : vector<6x32x128xi1>, vector<6x32x128xf32>
      %cst_15 = arith.constant dense<0xFF800000> : vector<6x128xf32>
      %31 = vector.multi_reduction <maximumf>, %30, %cst_15 [1] : vector<6x32x128xf32> to vector<6x128xf32>
      %c0_16 = arith.constant 0 : index
      %c0_17 = arith.constant 0 : index
      %32 = vector.load %arg5[%c0_16, %c0_17] : memref<6x128xf32, #tpu.memory_space<vmem>>, vector<6x128xf32>
      tpu.vector_store %arg5[%c0_16, %c0_17], %31 {strides = array<i32>} : memref<6x128xf32, #tpu.memory_space<vmem>>, vector<6x128xf32>,
    } else {
    }
    return
  }
  func.func @transform_0(%arg0: i32, %arg1: i32) -> (i32, i32) {
    %c0_i32 = arith.constant 0 : i32
    return %arg0, %arg1 : i32, i32
  }
  func.func @transform_1(%arg0: i32, %arg1: i32) -> (i32, i32) {
    %c0_i32 = arith.constant 0 : i32
    %c0_i32_0 = arith.constant 0 : i32
    %c0_i32_1 = arith.constant 0 : i32
    return %c0_i32, %c0_i32_0 : i32, i32
  }
  func.func @transform_2(%arg0: i32, %arg1: i32) -> (i32, i32) {
    %c0_i32 = arith.constant 0 : i32
    %c0_i32_0 = arith.constant 0 : i32
    %c0_i32_1 = arith.constant 0 : i32
    return %c0_i32, %c0_i32_0 : i32, i32
  }
  func.func @transform_3(%arg0: i32, %arg1: i32) -> (i32, i32) {
    %c0_i32 = arith.constant 0 : i32
    %c0_i32_0 = arith.constant 0 : i32
    return %arg0, %c0_i32 : i32, i32
  }
}

module attributes {stable_mosaic.version = 11 : i64} {
  func.func @_readout_mlp_kernel(%arg0: i32, %arg1: i32, %arg2: memref<6x128xf32, #tpu.memory_space<vmem>>, %arg3: memref<128x128xbf16, #tpu.memory_space<vmem>>, %arg4: memref<1x128xf32, #tpu.memory_space<vmem>>, %arg5: memref<128x128xbf16, #tpu.memory_space<vmem>>, %arg6: memref<1x128xf32, #tpu.memory_space<vmem>>, %arg7: memref<6x128xf32, #tpu.memory_space<vmem>>, %arg8: memref<6x128xf32, #tpu.memory_space<vmem>>) attributes {dimension_semantics = [#tpu.dimension_semantics<parallel>, #tpu.dimension_semantics<arbitrary>], iteration_bounds = array<i64: 1, 1>, scalar_prefetch = 0 : i64, scratch_operands = 1 : i64, tpu.core_type = #tpu.core_type<tc>, window_params = [{transform_indices = @transform_0, window_bounds = array<i64: 6, 128>}, {transform_indices = @transform_1, window_bounds = array<i64: 128, 128>}, {transform_indices = @transform_2, window_bounds = array<i64: 1, 128>}, {transform_indices = @transform_3, window_bounds = array<i64: 128, 128>}, {pipeline_mode = #tpu.pipeline_mode<synchronous>, transform_indices = @transform_4, window_bounds = array<i64: 1, 128>}, {transform_indices = @transform_5, window_bounds = array<i64: 6, 128>}]} {
    %c0_i32 = arith.constant 0 : i32
    %0 = arith.cmpi eq, %arg1, %c0_i32 : i32
    %1 = arith.extui %0 : i1 to i32
    %c0_i32_0 = arith.constant 0 : i32
    %2 = arith.cmpi ne, %1, %c0_i32_0 : i32
    scf.if %2 {
      %cst_19 = arith.constant 0.000000e+00 : f32
      %32 = vector.broadcast %cst_19 : f32 to vector<6x128xf32>
      %c0_20 = arith.constant 0 : index
      %c0_21 = arith.constant 0 : index
      %33 = vector.load %arg8[%c0_20, %c0_21] : memref<6x128xf32, #tpu.memory_space<vmem>>, vector<6x128xf32>
      tpu.vector_store %arg8[%c0_20, %c0_21], %32 {strides = array<i32>} : memref<6x128xf32, #tpu.memory_space<vmem>>, vector<6x128xf32>,
    } else {
    }
    %c0 = arith.constant 0 : index
    %c0_1 = arith.constant 0 : index
    %3 = vector.load %arg2[%c0, %c0_1] : memref<6x128xf32, #tpu.memory_space<vmem>>, vector<6x128xf32>
    %4 = arith.truncf %3 : vector<6x128xf32> to vector<6x128xbf16>
    %c0_2 = arith.constant 0 : index
    %c0_3 = arith.constant 0 : index
    %5 = vector.load %arg3[%c0_2, %c0_3] : memref<128x128xbf16, #tpu.memory_space<vmem>>, vector<128x128xbf16>
    %cst = arith.constant dense<0.000000e+00> : vector<6x128xf32>
    %6 = tpu.matmul %4, %5, %cst {dimension_numbers = #tpu.dot_dimension_numbers<[1], [0], [0], [1], [0, 0, 1, 1], [], []>} : vector<6x128xbf16>, vector<128x128xbf16>, vector<6x128xf32> -> vector<6x128xf32>
    %c0_4 = arith.constant 0 : index
    %c0_5 = arith.constant 0 : index
    %7 = vector.load %arg4[%c0_4, %c0_5] : memref<1x128xf32, #tpu.memory_space<vmem>>, vector<1x128xf32>
    %8 = vector.broadcast %7 : vector<1x128xf32> to vector<6x128xf32>
    %9 = arith.addf %6, %8 : vector<6x128xf32>
    %10 = arith.mulf %9, %9 : vector<6x128xf32>
    %11 = arith.mulf %9, %10 : vector<6x128xf32>
    %cst_6 = arith.constant 4.471500e-02 : f32
    %12 = vector.broadcast %cst_6 : f32 to vector<6x128xf32>
    %13 = arith.mulf %12, %11 : vector<6x128xf32>
    %14 = arith.addf %9, %13 : vector<6x128xf32>
    %cst_7 = arith.constant 0.797884583 : f32
    %15 = vector.broadcast %cst_7 : f32 to vector<6x128xf32>
    %16 = arith.mulf %15, %14 : vector<6x128xf32>
    %17 = math.tanh %16 : vector<6x128xf32>
    %cst_8 = arith.constant 1.000000e+00 : f32
    %18 = vector.broadcast %cst_8 : f32 to vector<6x128xf32>
    %19 = arith.addf %18, %17 : vector<6x128xf32>
    %cst_9 = arith.constant 5.000000e-01 : f32
    %20 = vector.broadcast %cst_9 : f32 to vector<6x128xf32>
    %21 = arith.mulf %20, %19 : vector<6x128xf32>
    %22 = arith.mulf %9, %21 : vector<6x128xf32>
    %c0_10 = arith.constant 0 : index
    %c0_11 = arith.constant 0 : index
    %23 = vector.load %arg8[%c0_10, %c0_11] : memref<6x128xf32, #tpu.memory_space<vmem>>, vector<6x128xf32>
    %24 = arith.truncf %22 : vector<6x128xf32> to vector<6x128xbf16>
    %c0_12 = arith.constant 0 : index
    %c0_13 = arith.constant 0 : index
    %25 = vector.load %arg5[%c0_12, %c0_13] : memref<128x128xbf16, #tpu.memory_space<vmem>>, vector<128x128xbf16>
    %cst_14 = arith.constant dense<0.000000e+00> : vector<6x128xf32>
    %26 = tpu.matmul %24, %25, %cst_14 {dimension_numbers = #tpu.dot_dimension_numbers<[1], [0], [0], [1], [0, 0, 1, 1], [], []>} : vector<6x128xbf16>, vector<128x128xbf16>, vector<6x128xf32> -> vector<6x128xf32>
    %27 = arith.addf %23, %26 : vector<6x128xf32>
    %c0_15 = arith.constant 0 : index
    %c0_16 = arith.constant 0 : index
    %28 = vector.load %arg8[%c0_15, %c0_16] : memref<6x128xf32, #tpu.memory_space<vmem>>, vector<6x128xf32>
    tpu.vector_store %arg8[%c0_15, %c0_16], %27 {strides = array<i32>} : memref<6x128xf32, #tpu.memory_space<vmem>>, vector<6x128xf32>,
    %c0_i32_17 = arith.constant 0 : i32
    %29 = arith.cmpi eq, %arg1, %c0_i32_17 : i32
    %30 = arith.extui %29 : i1 to i32
    %c0_i32_18 = arith.constant 0 : i32
    %31 = arith.cmpi ne, %30, %c0_i32_18 : i32
    scf.if %31 {
      %c0_19 = arith.constant 0 : index
      %c0_20 = arith.constant 0 : index
      %32 = vector.load %arg8[%c0_19, %c0_20] : memref<6x128xf32, #tpu.memory_space<vmem>>, vector<6x128xf32>
      %c0_21 = arith.constant 0 : index
      %c0_22 = arith.constant 0 : index
      %33 = vector.load %arg6[%c0_21, %c0_22] : memref<1x128xf32, #tpu.memory_space<vmem>>, vector<1x128xf32>
      %34 = vector.broadcast %33 : vector<1x128xf32> to vector<6x128xf32>
      %35 = arith.addf %32, %34 : vector<6x128xf32>
      %c0_23 = arith.constant 0 : index
      %c0_24 = arith.constant 0 : index
      %36 = vector.load %arg7[%c0_23, %c0_24] : memref<6x128xf32, #tpu.memory_space<vmem>>, vector<6x128xf32>
      tpu.vector_store %arg7[%c0_23, %c0_24], %35 {strides = array<i32>} : memref<6x128xf32, #tpu.memory_space<vmem>>, vector<6x128xf32>,
    } else {
    }
    return
  }
  func.func @transform_0(%arg0: i32, %arg1: i32) -> (i32, i32) {
    %c0_i32 = arith.constant 0 : i32
    %c0_i32_0 = arith.constant 0 : i32
    return %arg0, %c0_i32 : i32, i32
  }
  func.func @transform_1(%arg0: i32, %arg1: i32) -> (i32, i32) {
    %c0_i32 = arith.constant 0 : i32
    %c0_i32_0 = arith.constant 0 : i32
    return %c0_i32, %arg1 : i32, i32
  }
  func.func @transform_2(%arg0: i32, %arg1: i32) -> (i32, i32) {
    %c0_i32 = arith.constant 0 : i32
    %c0_i32_0 = arith.constant 0 : i32
    return %c0_i32, %arg1 : i32, i32
  }
  func.func @transform_3(%arg0: i32, %arg1: i32) -> (i32, i32) {
    %c0_i32 = arith.constant 0 : i32
    %c0_i32_0 = arith.constant 0 : i32
    return %arg1, %c0_i32 : i32, i32
  }
  func.func @transform_4(%arg0: i32, %arg1: i32) -> (i32, i32) {
    %c0_i32 = arith.constant 0 : i32
    %c0_i32_0 = arith.constant 0 : i32
    %c0_i32_1 = arith.constant 0 : i32
    return %c0_i32, %c0_i32_0 : i32, i32
  }
  func.func @transform_5(%arg0: i32, %arg1: i32) -> (i32, i32) {
    %c0_i32 = arith.constant 0 : i32
    %c0_i32_0 = arith.constant 0 : i32
    return %arg0, %c0_i32 : i32, i32
  }
}

</mosaic_0001>

<llo_original>
// kernel: stc_connector_forward.3
$region0: #{stc_connector_forward.3}
  #allocation0 [shape = 'u32[]', space=smem, size = 0x4, offset = 0x4, fixed_abs, tag = 'smem constant byte address 0x4 - core index']
  #allocation1 [shape = 'u32[144,128]{1,0:T(1,128)}', space=vmem, size = 0x12000, scoped, tag = 'internal scratch']
  #allocation2 [shape = 'f32[6,128]{1,0:T(8,128)}', space=vmem, size = 0x1000, scoped, tag = 'scratch operand']
  %s0 = inlined_call_operand.vmem [shape: f32[6,128], index: 0, kind: input, shape index: {}]
  %s1 = inlined_call_operand.vmem [shape: bf16[128,128], index: 1, kind: input, shape index: {}]
  %s2 = inlined_call_operand.vmem [shape: f32[1,128], index: 2, kind: input, shape index: {}]
  %s3 = inlined_call_operand.vmem [shape: bf16[128,128], index: 3, kind: input, shape index: {}]
  %s4 = inlined_call_operand.vmem [shape: f32[1,128], index: 4, kind: input, shape index: {}]
  %s5 = inlined_call_operand.vmem [shape: f32[6,128], index: 5, kind: output, shape index: {}]
  %s6 = sld [smem:[#allocation0]]
  $region38: #{stc_connector_forward.3} parent=0
    _
  %s8 = ssub.s32 1, %s6
  %s9 = scalar_select 0, %s8, %s6
  // Predicated region
  $region2: #{stc_connector_forward.3} parent=0 // pred_check
    _
  $region3: #{stc_connector_forward.3} parent=0 // pred_check_branch
    %11 = sbr.rel (0) target = $region5
  $region4: #{stc_connector_forward.3} parent=0 // pred_region
    _
  $region5: #{stc_connector_forward.3} parent=0 // pred_fallthru
    _
  // Predicated region
  $region6: #{stc_connector_forward.3} parent=0 // pred_check
    _
  $region7: #{stc_connector_forward.3} parent=0 // pred_check_branch
    %13 = sbr.rel (0) target = $region9
  $region8: #{stc_connector_forward.3} parent=0 // pred_region
    _
  $region9: #{stc_connector_forward.3} parent=0 // pred_fallthru
    _
  // Predicated region
  $region10: #{stc_connector_forward.3} parent=0 // pred_check
    _
  $region11: #{stc_connector_forward.3} parent=0 // pred_check_branch
    %15 = sbr.rel (0) target = $region13
  $region12: #{stc_connector_forward.3} parent=0 // pred_region
    _
  $region13: #{stc_connector_forward.3} parent=0 // pred_fallthru
    _
  // Predicated region
  $region14: #{stc_connector_forward.3} parent=0 // pred_check
    _
  $region15: #{stc_connector_forward.3} parent=0 // pred_check_branch
    %17 = sbr.rel (0) target = $region17
  $region16: #{stc_connector_forward.3} parent=0 // pred_region
    _
  $region17: #{stc_connector_forward.3} parent=0 // pred_fallthru
    _
  // Predicated region
  $region18: #{stc_connector_forward.3} parent=0 // pred_check
    _
  $region19: #{stc_connector_forward.3} parent=0 // pred_check_branch
    %19 = sbr.rel (0) target = $region21
  $region20: #{stc_connector_forward.3} parent=0 // pred_region
    _
  $region21: #{stc_connector_forward.3} parent=0 // pred_fallthru
    _
  %p21 = scmp.eq.s32.totalorder 0, 0
  // Predicated region
  $region22: #{stc_connector_forward.3} parent=0 // pred_check
    %p22 = pneg %p21
  $region23: #{stc_connector_forward.3} parent=0 // pred_check_branch
    %24 = sbr.rel (%p22) target = $region25
  $region24: #{stc_connector_forward.3} parent=0 // pred_region
    %25 = vst [vmem:[#allocation2] sm:$0x3f] 0.0
  $region25: #{stc_connector_forward.3} parent=0 // pred_fallthru
    _
  %v26 = vld [vmem:[%s0] sm:$0x3f]
  %v27 = vpack.c.bf16 %v26, %v26
  %v28 = vld [vmem:[%s1] sm:$0xf]
  %v29 = vld [vmem:[%s1 + $0x4] sm:$0xf]
  %v30 = vld [vmem:[%s1 + $0x8] sm:$0xf]
  %v31 = vld [vmem:[%s1 + $0xc] sm:$0xf]
  %v32 = vld [vmem:[%s1 + $0x10] sm:$0xf]
  %v33 = vld [vmem:[%s1 + $0x14] sm:$0xf]
  %v34 = vld [vmem:[%s1 + $0x18] sm:$0xf]
  %v35 = vld [vmem:[%s1 + $0x1c] sm:$0xf]
  %v36 = vld [vmem:[%s1 + $0x20] sm:$0xf]
  %v37 = vld [vmem:[%s1 + $0x24] sm:$0xf]
  %v38 = vld [vmem:[%s1 + $0x28] sm:$0xf]
  %v39 = vld [vmem:[%s1 + $0x2c] sm:$0xf]
  %v40 = vld [vmem:[%s1 + $0x30] sm:$0xf]
  %v41 = vld [vmem:[%s1 + $0x34] sm:$0xf]
  %v42 = vld [vmem:[%s1 + $0x38] sm:$0xf]
  %v43 = vld [vmem:[%s1 + $0x3c] sm:$0xf]
  %v44 = vld [vmem:[%s2] sm:$0x1]
  %v46 = vlaneseq
  %v47 = vshrl.u32 %v46, 7
  %v48 = vsub.s32 0, %v47
  %v49 = vrot.slane %v44, %v48
  %v67 = vunpack.c.l.b16 %v28
  %v68 = vunpack.c.l.b16 %v29
  %v69 = vunpack.c.l.b16 %v30
  %v70 = vunpack.c.l.b16 %v31
  %v71 = vunpack.c.l.b16 %v32
  %v72 = vunpack.c.l.b16 %v33
  %v73 = vunpack.c.l.b16 %v34
  %v74 = vunpack.c.l.b16 %v35
  %v75 = vunpack.c.l.b16 %v36
  %v76 = vunpack.c.l.b16 %v37
  %v77 = vunpack.c.l.b16 %v38
  %v78 = vunpack.c.l.b16 %v39
  %v79 = vunpack.c.l.b16 %v40
  %v80 = vunpack.c.l.b16 %v41
  %v81 = vunpack.c.l.b16 %v42
  %v82 = vunpack.c.l.b16 %v43
  %v83 = vpack.c.b16 %v68, %v67
  %v84 = vpack.c.b16 %v70, %v69
  %v85 = vpack.c.b16 %v72, %v71
  %v86 = vpack.c.b16 %v74, %v73
  %v87 = vpack.c.b16 %v76, %v75
  %v88 = vpack.c.b16 %v78, %v77
  %v89 = vpack.c.b16 %v80, %v79
  %v90 = vpack.c.b16 %v82, %v81
  %99 = vmatprep.subr.bf16.mxu0 0
  %100 = vmatpush1.bf16.msra.mxu0 %v83
  %101 = vmatprep.subr.bf16.mxu0 0
  %102 = vmatpush1.bf16.msra.mxu0 %v84
  %103 = vmatprep.subr.bf16.mxu0 0
  %104 = vmatpush1.bf16.msra.mxu0 %v85
  %105 = vmatprep.subr.bf16.mxu0 0
  %106 = vmatpush1.bf16.msra.mxu0 %v86
  %107 = vmatprep.subr.bf16.mxu0 0
  %108 = vmatpush1.bf16.msra.mxu0 %v87
  %109 = vmatprep.subr.bf16.mxu0 0
  %110 = vmatpush1.bf16.msra.mxu0 %v88
  %111 = vmatprep.subr.bf16.mxu0 0
  %112 = vmatpush1.bf16.msra.mxu0 %v89
  %113 = vmatprep.subr.bf16.mxu0 0
  %114 = vmatpush1.bf16.msra.mxu0 %v90
  %115 = vmatprep.subr.bf16.mxu0 0
  %116 = vmatpush1.bf16.msra.mxu0 0
  %117 = vmatprep.subr.bf16.mxu0 0
  %118 = vmatpush1.bf16.msra.mxu0 0
  %119 = vmatprep.subr.bf16.mxu0 0
  %120 = vmatpush1.bf16.msra.mxu0 0
  %121 = vmatprep.subr.bf16.mxu0 0
  %122 = vmatpush1.bf16.msra.mxu0 0
  %123 = vmatprep.subr.bf16.mxu0 0
  %124 = vmatpush1.bf16.msra.mxu0 0
  %125 = vmatprep.subr.bf16.mxu0 0
  %126 = vmatpush1.bf16.msra.mxu0 0
  %127 = vmatprep.subr.bf16.mxu0 0
  %128 = vmatpush1.bf16.msra.mxu0 0
  %129 = vmatprep.subr.bf16.mxu0 0
  %130 = vmatpush1.bf16.msra.mxu0 0
  %131 = vmatprep.mubr.bf16.mxu0 0
  %132 = vmatmul.mubr.bf16.gmra.mrb[0].mxu0 %v27
  %v133 = vpop.f32.mrb[0].mxu0
  %v134 = vadd.f32 %v49, %v133
  %v135 = vpop.f32.mrb[0].mxu0
  %v136 = vpop.f32.mrb[0].mxu0
  %v137 = vpop.f32.mrb[0].mxu0
  %138 = vdwg.mxu0
  %v139 = vmul.f32 %v134, %v134
  %v140 = vmul.f32 %v134, %v139
  %v141 = vmul.f32 %v140, 0.044715
  %v142 = vadd.f32 %v134, %v141
  %v143 = vmul.f32 %v142, 0.7978846
  %v144 = vtanh.pop %v143
  %v145 = vadd.f32 %v144, 1.0
  %v146 = vmul.f32 %v145, 0.5
  %v147 = vmul.f32 %v134, %v146
  %v148 = vld [vmem:[#allocation2] sm:$0x3f]
  %v149 = vpack.c.bf16 %v147, %v147
  %v150 = vld [vmem:[%s3] sm:$0xf]
  %v151 = vld [vmem:[%s3 + $0x4] sm:$0xf]
  %v152 = vld [vmem:[%s3 + $0x8] sm:$0xf]
  %v153 = vld [vmem:[%s3 + $0xc] sm:$0xf]
  %v154 = vld [vmem:[%s3 + $0x10] sm:$0xf]
  %v155 = vld [vmem:[%s3 + $0x14] sm:$0xf]
  %v156 = vld [vmem:[%s3 + $0x18] sm:$0xf]
  %v157 = vld [vmem:[%s3 + $0x1c] sm:$0xf]
  %v158 = vld [vmem:[%s3 + $0x20] sm:$0xf]
  %v159 = vld [vmem:[%s3 + $0x24] sm:$0xf]
  %v160 = vld [vmem:[%s3 + $0x28] sm:$0xf]
  %v161 = vld [vmem:[%s3 + $0x2c] sm:$0xf]
  %v162 = vld [vmem:[%s3 + $0x30] sm:$0xf]
  %v163 = vld [vmem:[%s3 + $0x34] sm:$0xf]
  %v164 = vld [vmem:[%s3 + $0x38] sm:$0xf]
  %v165 = vld [vmem:[%s3 + $0x3c] sm:$0xf]
  %v182 = vunpack.c.l.b16 %v150
  %v183 = vunpack.c.l.b16 %v151
  %v184 = vunpack.c.l.b16 %v152
  %v185 = vunpack.c.l.b16 %v153
  %v186 = vunpack.c.l.b16 %v154
  %v187 = vunpack.c.l.b16 %v155
  %v188 = vunpack.c.l.b16 %v156
  %v189 = vunpack.c.l.b16 %v157
  %v190 = vunpack.c.l.b16 %v158
  %v191 = vunpack.c.l.b16 %v159
  %v192 = vunpack.c.l.b16 %v160
  %v193 = vunpack.c.l.b16 %v161
  %v194 = vunpack.c.l.b16 %v162
  %v195 = vunpack.c.l.b16 %v163
  %v196 = vunpack.c.l.b16 %v164
  %v197 = vunpack.c.l.b16 %v165
  %v198 = vpack.c.b16 %v183, %v182
  %v199 = vpack.c.b16 %v185, %v184
  %v200 = vpack.c.b16 %v187, %v186
  %v201 = vpack.c.b16 %v189, %v188
  %v202 = vpack.c.b16 %v191, %v190
  %v203 = vpack.c.b16 %v193, %v192
  %v204 = vpack.c.b16 %v195, %v194
  %v205 = vpack.c.b16 %v197, %v196
  %214 = vmatprep.subr.bf16.mxu0 0
  %215 = vmatpush1.bf16.msra.mxu0 %v198
  %216 = vmatprep.subr.bf16.mxu0 0
  %217 = vmatpush1.bf16.msra.mxu0 %v199
  %218 = vmatprep.subr.bf16.mxu0 0
  %219 = vmatpush1.bf16.msra.mxu0 %v200
  %220 = vmatprep.subr.bf16.mxu0 0
  %221 = vmatpush1.bf16.msra.mxu0 %v201
  %222 = vmatprep.subr.bf16.mxu0 0
  %223 = vmatpush1.bf16.msra.mxu0 %v202
  %224 = vmatprep.subr.bf16.mxu0 0
  %225 = vmatpush1.bf16.msra.mxu0 %v203
  %226 = vmatprep.subr.bf16.mxu0 0
  %227 = vmatpush1.bf16.msra.mxu0 %v204
  %228 = vmatprep.subr.bf16.mxu0 0
  %229 = vmatpush1.bf16.msra.mxu0 %v205
  %230 = vmatprep.subr.bf16.mxu0 0
  %231 = vmatpush1.bf16.msra.mxu0 0
  %232 = vmatprep.subr.bf16.mxu0 0
  %233 = vmatpush1.bf16.msra.mxu0 0
  %234 = vmatprep.subr.bf16.mxu0 0
  %235 = vmatpush1.bf16.msra.mxu0 0
  %236 = vmatprep.subr.bf16.mxu0 0
  %237 = vmatpush1.bf16.msra.mxu0 0
  %238 = vmatprep.subr.bf16.mxu0 0
  %239 = vmatpush1.bf16.msra.mxu0 0
  %240 = vmatprep.subr.bf16.mxu0 0
  %241 = vmatpush1.bf16.msra.mxu0 0
  %242 = vmatprep.subr.bf16.mxu0 0
  %243 = vmatpush1.bf16.msra.mxu0 0
  %244 = vmatprep.subr.bf16.mxu0 0
  %245 = vmatpush1.bf16.msra.mxu0 0
  %246 = vmatprep.mubr.bf16.mxu0 0
  %247 = vmatmul.mubr.bf16.gmra.mrb[0].mxu0 %v149
  %v248 = vpop.f32.mrb[0].mxu0
  %v249 = vadd.f32 0.0, %v248
  %v250 = vpop.f32.mrb[0].mxu0
  %v251 = vpop.f32.mrb[0].mxu0
  %v252 = vpop.f32.mrb[0].mxu0
  %253 = vdwg.mxu0
  %v254 = vadd.f32 %v148, %v249
  %255 = vst [vmem:[#allocation2] sm:$0x3f] %v254
  // Predicated region
  $region26: #{stc_connector_forward.3} parent=0 // pred_check
    %p256 = pneg %p21
  $region27: #{stc_connector_forward.3} parent=0 // pred_check_branch
    %258 = sbr.rel (%p256) target = $region29
  $region28: #{stc_connector_forward.3} parent=0 // pred_region
    %v259 = vld [vmem:[#allocation2] sm:$0x3f]
    %v260 = vld [vmem:[%s4] sm:$0x1]
    %v262 = vlaneseq
    %v263 = vshrl.u32 %v262, 7
    %v264 = vsub.s32 0, %v263
    %v265 = vrot.slane %v260, %v264
    %v267 = vadd.f32 %v259, %v265
    %268 = vst [vmem:[%s5] sm:$0x3f] %v267
  $region29: #{stc_connector_forward.3} parent=0 // pred_fallthru
    _
  // Predicated region
  $region30: #{stc_connector_forward.3} parent=0 // pred_check
    _
  $region31: #{stc_connector_forward.3} parent=0 // pred_check_branch
    %270 = sbr.rel (0) target = $region33
  $region32: #{stc_connector_forward.3} parent=0 // pred_region
    _
  $region33: #{stc_connector_forward.3} parent=0 // pred_fallthru
    _
  // Predicated region
  $region34: #{stc_connector_forward.3} parent=0 // pred_check
    _
  $region35: #{stc_connector_forward.3} parent=0 // pred_check_branch
    %272 = sbr.rel (0) target = $region37
  $region36: #{stc_connector_forward.3} parent=0 // pred_region
    _
  $region37: #{stc_connector_forward.3} parent=0 // pred_fallthru
    _

// kernel: stc_connector_forward.2
$region0: #{stc_connector_forward.2}
  #allocation0 [shape = 'u32[]', space=smem, size = 0x4, offset = 0x4, fixed_abs, tag = 'smem constant byte address 0x4 - core index']
  #allocation1 [shape = 'u32[144,128]{1,0:T(1,128)}', space=vmem, size = 0x12000, scoped, tag = 'internal scratch']
  #allocation2 [shape = 'f32[192,128]{1,0:T(8,128)}', space=vmem, size = 0x18000, scoped, tag = 'scratch operand']
  %s0 = inlined_call_operand.vmem [shape: bf16[192,256], index: 0, kind: input, shape index: {}]
  %s1 = inlined_call_operand.vmem [shape: bf16[256,128], index: 1, kind: input, shape index: {}]
  %s2 = inlined_call_operand.vmem [shape: f32[1,128], index: 2, kind: input, shape index: {}]
  %s3 = inlined_call_operand.vmem [shape: f32[6,128], index: 3, kind: output, shape index: {}]
  %s4 = sld [smem:[#allocation0]]
  $region30: #{stc_connector_forward.2} parent=0
    _
  %s6 = ssub.s32 1, %s4
  %s7 = scalar_select 0, %s6, %s4
  // Predicated region
  $region2: #{stc_connector_forward.2} parent=0 // pred_check
    _
  $region3: #{stc_connector_forward.2} parent=0 // pred_check_branch
    %9 = sbr.rel (0) target = $region5
  $region4: #{stc_connector_forward.2} parent=0 // pred_region
    _
  $region5: #{stc_connector_forward.2} parent=0 // pred_fallthru
    _
  // Predicated region
  $region6: #{stc_connector_forward.2} parent=0 // pred_check
    _
  $region7: #{stc_connector_forward.2} parent=0 // pred_check_branch
    %11 = sbr.rel (0) target = $region9
  $region8: #{stc_connector_forward.2} parent=0 // pred_region
    _
  $region9: #{stc_connector_forward.2} parent=0 // pred_fallthru
    _
  // Predicated region
  $region10: #{stc_connector_forward.2} parent=0 // pred_check
    _
  $region11: #{stc_connector_forward.2} parent=0 // pred_check_branch
    %13 = sbr.rel (0) target = $region13
  $region12: #{stc_connector_forward.2} parent=0 // pred_region
    _
  $region13: #{stc_connector_forward.2} parent=0 // pred_fallthru
    _
  %p15 = scmp.eq.s32.totalorder 0, 0
  // Predicated region
  $region14: #{stc_connector_forward.2} parent=0 // pred_check
    %p16 = pneg %p15
  $region15: #{stc_connector_forward.2} parent=0 // pred_check_branch
    %18 = sbr.rel (%p16) target = $region17
  $region16: #{stc_connector_forward.2} parent=0 // pred_region
    %19 = vst [vmem:[#allocation2] sm:$0xff] 0.0
    %20 = vst [vmem:[#allocation2 + $0x8] sm:$0xff] 0.0
    %21 = vst [vmem:[#allocation2 + $0x10] sm:$0xff] 0.0
    %22 = vst [vmem:[#allocation2 + $0x18] sm:$0xff] 0.0
    %23 = vst [vmem:[#allocation2 + $0x20] sm:$0xff] 0.0
    %24 = vst [vmem:[#allocation2 + $0x28] sm:$0xff] 0.0
    %25 = vst [vmem:[#allocation2 + $0x30] sm:$0xff] 0.0
    %26 = vst [vmem:[#allocation2 + $0x38] sm:$0xff] 0.0
    %27 = vst [vmem:[#allocation2 + $0x40] sm:$0xff] 0.0
    %28 = vst [vmem:[#allocation2 + $0x48] sm:$0xff] 0.0
    %29 = vst [vmem:[#allocation2 + $0x50] sm:$0xff] 0.0
    %30 = vst [vmem:[#allocation2 + $0x58] sm:$0xff] 0.0
    %31 = vst [vmem:[#allocation2 + $0x60] sm:$0xff] 0.0
    %32 = vst [vmem:[#allocation2 + $0x68] sm:$0xff] 0.0
    %33 = vst [vmem:[#allocation2 + $0x70] sm:$0xff] 0.0
    %34 = vst [vmem:[#allocation2 + $0x78] sm:$0xff] 0.0
    %35 = vst [vmem:[#allocation2 + $0x80] sm:$0xff] 0.0
    %36 = vst [vmem:[#allocation2 + $0x88] sm:$0xff] 0.0
    %37 = vst [vmem:[#allocation2 + $0x90] sm:$0xff] 0.0
    %38 = vst [vmem:[#allocation2 + $0x98] sm:$0xff] 0.0
    %39 = vst [vmem:[#allocation2 + $0xa0] sm:$0xff] 0.0
    %40 = vst [vmem:[#allocation2 + $0xa8] sm:$0xff] 0.0
    %41 = vst [vmem:[#allocation2 + $0xb0] sm:$0xff] 0.0
    %42 = vst [vmem:[#allocation2 + $0xb8] sm:$0xff] 0.0
  $region17: #{stc_connector_forward.2} parent=0 // pred_fallthru
    _
  %s43 = smul.u32 0, 256
  %s44 = sshra.s32 %s43, 3
  %s45 = sand.u32 %s43, 7
  %s46 = smul.addr %s44, 4
  %s47 = scalar_lea.vmem %s1, %s46
  %v48 = vld [vmem:[%s47] sm:$0xf]
  %v49 = vld [vmem:[%s47 + $0x4] sm:$0xf]
  %v50 = vld [vmem:[%s47 + $0x8] sm:$0xf]
  %v51 = vld [vmem:[%s47 + $0xc] sm:$0xf]
  %v52 = vld [vmem:[%s47 + $0x10] sm:$0xf]
  %v53 = vld [vmem:[%s47 + $0x14] sm:$0xf]
  %v54 = vld [vmem:[%s47 + $0x18] sm:$0xf]
  %v55 = vld [vmem:[%s47 + $0x1c] sm:$0xf]
  %v56 = vld [vmem:[%s47 + $0x20] sm:$0xf]
  %v57 = vld [vmem:[%s47 + $0x24] sm:$0xf]
  %v58 = vld [vmem:[%s47 + $0x28] sm:$0xf]
  %v59 = vld [vmem:[%s47 + $0x2c] sm:$0xf]
  %v60 = vld [vmem:[%s47 + $0x30] sm:$0xf]
  %v61 = vld [vmem:[%s47 + $0x34] sm:$0xf]
  %v62 = vld [vmem:[%s47 + $0x38] sm:$0xf]
  %v63 = vld [vmem:[%s47 + $0x3c] sm:$0xf]
  %v64 = vld [vmem:[%s47 + $0x40] sm:$0xf]
  %v65 = vld [vmem:[%s47 + $0x44] sm:$0xf]
  %v66 = vld [vmem:[%s47 + $0x48] sm:$0xf]
  %v67 = vld [vmem:[%s47 + $0x4c] sm:$0xf]
  %v68 = vld [vmem:[%s47 + $0x50] sm:$0xf]
  %v69 = vld [vmem:[%s47 + $0x54] sm:$0xf]
  %v70 = vld [vmem:[%s47 + $0x58] sm:$0xf]
  %v71 = vld [vmem:[%s47 + $0x5c] sm:$0xf]
  %v72 = vld [vmem:[%s47 + $0x60] sm:$0xf]
  %v73 = vld [vmem:[%s47 + $0x64] sm:$0xf]
  %v74 = vld [vmem:[%s47 + $0x68] sm:$0xf]
  %v75 = vld [vmem:[%s47 + $0x6c] sm:$0xf]
  %v76 = vld [vmem:[%s47 + $0x70] sm:$0xf]
  %v77 = vld [vmem:[%s47 + $0x74] sm:$0xf]
  %v78 = vld [vmem:[%s47 + $0x78] sm:$0xf]
  %v79 = vld [vmem:[%s47 + $0x7c] sm:$0xf]
  %v80 = vld [vmem:[#allocation2] sm:$0xff]
  %v81 = vld [vmem:[#allocation2 + $0x8] sm:$0xff]
  %v82 = vld [vmem:[#allocation2 + $0x10] sm:$0xff]
  %v83 = vld [vmem:[#allocation2 + $0x18] sm:$0xff]
  %v84 = vld [vmem:[#allocation2 + $0x20] sm:$0xff]
  %v85 = vld [vmem:[#allocation2 + $0x28] sm:$0xff]
  %v86 = vld [vmem:[#allocation2 + $0x30] sm:$0xff]
  %v87 = vld [vmem:[#allocation2 + $0x38] sm:$0xff]
  %v88 = vld [vmem:[#allocation2 + $0x40] sm:$0xff]
  %v89 = vld [vmem:[#allocation2 + $0x48] sm:$0xff]
  %v90 = vld [vmem:[#allocation2 + $0x50] sm:$0xff]
  %v91 = vld [vmem:[#allocation2 + $0x58] sm:$0xff]
  %v92 = vld [vmem:[#allocation2 + $0x60] sm:$0xff]
  %v93 = vld [vmem:[#allocation2 + $0x68] sm:$0xff]
  %v94 = vld [vmem:[#allocation2 + $0x70] sm:$0xff]
  %v95 = vld [vmem:[#allocation2 + $0x78] sm:$0xff]
  %v96 = vld [vmem:[#allocation2 + $0x80] sm:$0xff]
  %v97 = vld [vmem:[#allocation2 + $0x88] sm:$0xff]
  %v98 = vld [vmem:[#allocation2 + $0x90] sm:$0xff]
  %v99 = vld [vmem:[#allocation2 + $0x98] sm:$0xff]
  %v100 = vld [vmem:[#allocation2 + $0xa0] sm:$0xff]
  %v101 = vld [vmem:[#allocation2 + $0xa8] sm:$0xff]
  %v102 = vld [vmem:[#allocation2 + $0xb0] sm:$0xff]
  %v103 = vld [vmem:[#allocation2 + $0xb8] sm:$0xff]
  %v104 = vld [vmem:[%s0] sm:$0xff]
  %v105 = vld [vmem:[%s0 + $0x8] sm:$0xff]
  %v106 = vld [vmem:[%s0 + $0x10] sm:$0xff]
  %v107 = vld [vmem:[%s0 + $0x18] sm:$0xff]
  %v108 = vld [vmem:[%s0 + $0x20] sm:$0xff]
  %v109 = vld [vmem:[%s0 + $0x28] sm:$0xff]
  %v110 = vld [vmem:[%s0 + $0x30] sm:$0xff]
  %v111 = vld [vmem:[%s0 + $0x38] sm:$0xff]
  %v112 = vld [vmem:[%s0 + $0x40] sm:$0xff]
  %v113 = vld [vmem:[%s0 + $0x48] sm:$0xff]
  %v114 = vld [vmem:[%s0 + $0x50] sm:$0xff]
  %v115 = vld [vmem:[%s0 + $0x58] sm:$0xff]
  %v116 = vld [vmem:[%s0 + $0x60] sm:$0xff]
  %v117 = vld [vmem:[%s0 + $0x68] sm:$0xff]
  %v118 = vld [vmem:[%s0 + $0x70] sm:$0xff]
  %v119 = vld [vmem:[%s0 + $0x78] sm:$0xff]
  %v120 = vld [vmem:[%s0 + $0x80] sm:$0xff]
  %v121 = vld [vmem:[%s0 + $0x88] sm:$0xff]
  %v122 = vld [vmem:[%s0 + $0x90] sm:$0xff]
  %v123 = vld [vmem:[%s0 + $0x98] sm:$0xff]
  %v124 = vld [vmem:[%s0 + $0xa0] sm:$0xff]
  %v125 = vld [vmem:[%s0 + $0xa8] sm:$0xff]
  %v126 = vld [vmem:[%s0 + $0xb0] sm:$0xff]
  %v127 = vld [vmem:[%s0 + $0xb8] sm:$0xff]
  %v152 = vunpack.c.l.b16 %v104
  %v153 = vunpack.c.h.b16 %v104
  %v154 = vunpack.c.l.b16 %v105
  %v155 = vunpack.c.h.b16 %v105
  %v156 = vunpack.c.l.b16 %v106
  %v157 = vunpack.c.h.b16 %v106
  %v158 = vunpack.c.l.b16 %v107
  %v159 = vunpack.c.h.b16 %v107
  %v160 = vunpack.c.l.b16 %v108
  %v161 = vunpack.c.h.b16 %v108
  %v162 = vunpack.c.l.b16 %v109
  %v163 = vunpack.c.h.b16 %v109
  %v164 = vunpack.c.l.b16 %v110
  %v165 = vunpack.c.h.b16 %v110
  %v166 = vunpack.c.l.b16 %v111
  %v167 = vunpack.c.h.b16 %v111
  %v168 = vunpack.c.l.b16 %v112
  %v169 = vunpack.c.h.b16 %v112
  %v170 = vunpack.c.l.b16 %v113
  %v171 = vunpack.c.h.b16 %v113
  %v172 = vunpack.c.l.b16 %v114
  %v173 = vunpack.c.h.b16 %v114
  %v174 = vunpack.c.l.b16 %v115
  %v175 = vunpack.c.h.b16 %v115
  %v176 = vunpack.c.l.b16 %v116
  %v177 = vunpack.c.h.b16 %v116
  %v178 = vunpack.c.l.b16 %v117
  %v179 = vunpack.c.h.b16 %v117
  %v180 = vunpack.c.l.b16 %v118
  %v181 = vunpack.c.h.b16 %v118
  %v182 = vunpack.c.l.b16 %v119
  %v183 = vunpack.c.h.b16 %v119
  %v184 = vunpack.c.l.b16 %v120
  %v185 = vunpack.c.h.b16 %v120
  %v186 = vunpack.c.l.b16 %v121
  %v187 = vunpack.c.h.b16 %v121
  %v188 = vunpack.c.l.b16 %v122
  %v189 = vunpack.c.h.b16 %v122
  %v190 = vunpack.c.l.b16 %v123
  %v191 = vunpack.c.h.b16 %v123
  %v192 = vunpack.c.l.b16 %v124
  %v193 = vunpack.c.h.b16 %v124
  %v194 = vunpack.c.l.b16 %v125
  %v195 = vunpack.c.h.b16 %v125
  %v196 = vunpack.c.l.b16 %v126
  %v197 = vunpack.c.h.b16 %v126
  %v198 = vunpack.c.l.b16 %v127
  %v199 = vunpack.c.h.b16 %v127
  %v200 = vpack.c.b16 %v154, %v152
  %v201 = vpack.c.b16 %v155, %v153
  %v202 = vpack.c.b16 %v158, %v156
  %v203 = vpack.c.b16 %v159, %v157
  %v204 = vpack.c.b16 %v162, %v160
  %v205 = vpack.c.b16 %v163, %v161
  %v206 = vpack.c.b16 %v166, %v164
  %v207 = vpack.c.b16 %v167, %v165
  %v208 = vpack.c.b16 %v170, %v168
  %v209 = vpack.c.b16 %v171, %v169
  %v210 = vpack.c.b16 %v174, %v172
  %v211 = vpack.c.b16 %v175, %v173
  %v212 = vpack.c.b16 %v178, %v176
  %v213 = vpack.c.b16 %v179, %v177
  %v214 = vpack.c.b16 %v182, %v180
  %v215 = vpack.c.b16 %v183, %v181
  %v216 = vpack.c.b16 %v186, %v184
  %v217 = vpack.c.b16 %v187, %v185
  %v218 = vpack.c.b16 %v190, %v188
  %v219 = vpack.c.b16 %v191, %v189
  %v220 = vpack.c.b16 %v194, %v192
  %v221 = vpack.c.b16 %v195, %v193
  %v222 = vpack.c.b16 %v198, %v196
  %v223 = vpack.c.b16 %v199, %v197
  %v280 = vunpack.c.l.b16 %v48
  %v281 = vunpack.c.l.b16 %v49
  %v282 = vunpack.c.l.b16 %v50
  %v283 = vunpack.c.l.b16 %v51
  %v284 = vunpack.c.l.b16 %v52
  %v285 = vunpack.c.l.b16 %v53
  %v286 = vunpack.c.l.b16 %v54
  %v287 = vunpack.c.l.b16 %v55
  %v288 = vunpack.c.l.b16 %v56
  %v289 = vunpack.c.l.b16 %v57
  %v290 = vunpack.c.l.b16 %v58
  %v291 = vunpack.c.l.b16 %v59
  %v292 = vunpack.c.l.b16 %v60
  %v293 = vunpack.c.l.b16 %v61
  %v294 = vunpack.c.l.b16 %v62
  %v295 = vunpack.c.l.b16 %v63
  %v296 = vunpack.c.l.b16 %v64
  %v297 = vunpack.c.l.b16 %v65
  %v298 = vunpack.c.l.b16 %v66
  %v299 = vunpack.c.l.b16 %v67
  %v300 = vunpack.c.l.b16 %v68
  %v301 = vunpack.c.l.b16 %v69
  %v302 = vunpack.c.l.b16 %v70
  %v303 = vunpack.c.l.b16 %v71
  %v304 = vunpack.c.l.b16 %v72
  %v305 = vunpack.c.l.b16 %v73
  %v306 = vunpack.c.l.b16 %v74
  %v307 = vunpack.c.l.b16 %v75
  %v308 = vunpack.c.l.b16 %v76
  %v309 = vunpack.c.l.b16 %v77
  %v310 = vunpack.c.l.b16 %v78
  %v311 = vunpack.c.l.b16 %v79
  %v312 = vpack.c.b16 %v281, %v280
  %v313 = vpack.c.b16 %v283, %v282
  %v314 = vpack.c.b16 %v285, %v284
  %v315 = vpack.c.b16 %v287, %v286
  %v316 = vpack.c.b16 %v289, %v288
  %v317 = vpack.c.b16 %v291, %v290
  %v318 = vpack.c.b16 %v293, %v292
  %v319 = vpack.c.b16 %v295, %v294
  %v320 = vpack.c.b16 %v297, %v296
  %v321 = vpack.c.b16 %v299, %v298
  %v322 = vpack.c.b16 %v301, %v300
  %v323 = vpack.c.b16 %v303, %v302
  %v324 = vpack.c.b16 %v305, %v304
  %v325 = vpack.c.b16 %v307, %v306
  %v326 = vpack.c.b16 %v309, %v308
  %v327 = vpack.c.b16 %v311, %v310
  %344 = vmatprep.subr.bf16.mxu0 0
  %345 = vmatpush1.bf16.msra.mxu0 %v312
  %346 = vmatprep.subr.bf16.mxu0 0
  %347 = vmatpush1.bf16.msra.mxu0 %v313
  %348 = vmatprep.subr.bf16.mxu0 0
  %349 = vmatpush1.bf16.msra.mxu0 %v314
  %350 = vmatprep.subr.bf16.mxu0 0
  %351 = vmatpush1.bf16.msra.mxu0 %v315
  %352 = vmatprep.subr.bf16.mxu0 0
  %353 = vmatpush1.bf16.msra.mxu0 %v316
  %354 = vmatprep.subr.bf16.mxu0 0
  %355 = vmatpush1.bf16.msra.mxu0 %v317
  %356 = vmatprep.subr.bf16.mxu0 0
  %357 = vmatpush1.bf16.msra.mxu0 %v318
  %358 = vmatprep.subr.bf16.mxu0 0
  %359 = vmatpush1.bf16.msra.mxu0 %v319
  %360 = vmatprep.subr.bf16.mxu0 0
  %361 = vmatpush1.bf16.msra.mxu0 %v320
  %362 = vmatprep.subr.bf16.mxu0 0
  %363 = vmatpush1.bf16.msra.mxu0 %v321
  %364 = vmatprep.subr.bf16.mxu0 0
  %365 = vmatpush1.bf16.msra.mxu0 %v322
  %366 = vmatprep.subr.bf16.mxu0 0
  %367 = vmatpush1.bf16.msra.mxu0 %v323
  %368 = vmatprep.subr.bf16.mxu0 0
  %369 = vmatpush1.bf16.msra.mxu0 %v324
  %370 = vmatprep.subr.bf16.mxu0 0
  %371 = vmatpush1.bf16.msra.mxu0 %v325
  %372 = vmatprep.subr.bf16.mxu0 0
  %373 = vmatpush1.bf16.msra.mxu0 %v326
  %374 = vmatprep.subr.bf16.mxu0 0
  %375 = vmatpush1.bf16.msra.mxu0 %v327
  %376 = vmatprep.mubr.bf16.mxu0 %v201
  %377 = vmatmul.mubr.bf16.gmra.mrb[0].mxu0 %v200
  %v378 = vpop.f32.mrb[0].mxu0
  %v379 = vadd.f32 0.0, %v378
  %v380 = vpop.f32.mrb[0].mxu0
  %v381 = vpop.f32.mrb[0].mxu0
  %v382 = vadd.f32 0.0, %v381
  %v383 = vpop.f32.mrb[0].mxu0
  %384 = vmatprep.mubr.bf16.mxu0 %v203
  %385 = vmatmul.mubr.bf16.gmra.mrb[0].mxu0 %v202
  %v386 = vpop.f32.mrb[0].mxu0
  %v387 = vadd.f32 0.0, %v386
  %v388 = vpop.f32.mrb[0].mxu0
  %v389 = vpop.f32.mrb[0].mxu0
  %v390 = vadd.f32 0.0, %v389
  %v391 = vpop.f32.mrb[0].mxu0
  %392 = vmatprep.mubr.bf16.mxu0 %v205
  %393 = vmatmul.mubr.bf16.gmra.mrb[0].mxu0 %v204
  %v394 = vpop.f32.mrb[0].mxu0
  %v395 = vadd.f32 0.0, %v394
  %v396 = vpop.f32.mrb[0].mxu0
  %v397 = vpop.f32.mrb[0].mxu0
  %v398 = vadd.f32 0.0, %v397
  %v399 = vpop.f32.mrb[0].mxu0
  %400 = vmatprep.mubr.bf16.mxu0 %v207
  %401 = vmatmul.mubr.bf16.gmra.mrb[0].mxu0 %v206
  %v402 = vpop.f32.mrb[0].mxu0
  %v403 = vadd.f32 0.0, %v402
  %v404 = vpop.f32.mrb[0].mxu0
  %v405 = vpop.f32.mrb[0].mxu0
  %v406 = vadd.f32 0.0, %v405
  %v407 = vpop.f32.mrb[0].mxu0
  %408 = vmatprep.mubr.bf16.mxu0 %v209
  %409 = vmatmul.mubr.bf16.gmra.mrb[0].mxu0 %v208
  %v410 = vpop.f32.mrb[0].mxu0
  %v411 = vadd.f32 0.0, %v410
  %v412 = vpop.f32.mrb[0].mxu0
  %v413 = vpop.f32.mrb[0].mxu0
  %v414 = vadd.f32 0.0, %v413
  %v415 = vpop.f32.mrb[0].mxu0
  %416 = vmatprep.mubr.bf16.mxu0 %v211
  %417 = vmatmul.mubr.bf16.gmra.mrb[0].mxu0 %v210
  %v418 = vpop.f32.mrb[0].mxu0
  %v419 = vadd.f32 0.0, %v418
  %v420 = vpop.f32.mrb[0].mxu0
  %v421 = vpop.f32.mrb[0].mxu0
  %v422 = vadd.f32 0.0, %v421
  %v423 = vpop.f32.mrb[0].mxu0
  %424 = vmatprep.mubr.bf16.mxu0 %v213
  %425 = vmatmul.mubr.bf16.gmra.mrb[0].mxu0 %v212
  %v426 = vpop.f32.mrb[0].mxu0
  %v427 = vadd.f32 0.0, %v426
  %v428 = vpop.f32.mrb[0].mxu0
  %v429 = vpop.f32.mrb[0].mxu0
  %v430 = vadd.f32 0.0, %v429
  %v431 = vpop.f32.mrb[0].mxu0
  %432 = vmatprep.mubr.bf16.mxu0 %v215
  %433 = vmatmul.mubr.bf16.gmra.mrb[0].mxu0 %v214
  %v434 = vpop.f32.mrb[0].mxu0
  %v435 = vadd.f32 0.0, %v434
  %v436 = vpop.f32.mrb[0].mxu0
  %v437 = vpop.f32.mrb[0].mxu0
  %v438 = vadd.f32 0.0, %v437
  %v439 = vpop.f32.mrb[0].mxu0
  %440 = vmatprep.mubr.bf16.mxu0 %v217
  %441 = vmatmul.mubr.bf16.gmra.mrb[0].mxu0 %v216
  %v442 = vpop.f32.mrb[0].mxu0
  %v443 = vadd.f32 0.0, %v442
  %v444 = vpop.f32.mrb[0].mxu0
  %v445 = vpop.f32.mrb[0].mxu0
  %v446 = vadd.f32 0.0, %v445
  %v447 = vpop.f32.mrb[0].mxu0
  %448 = vmatprep.mubr.bf16.mxu0 %v219
  %449 = vmatmul.mubr.bf16.gmra.mrb[0].mxu0 %v218
  %v450 = vpop.f32.mrb[0].mxu0
  %v451 = vadd.f32 0.0, %v450
  %v452 = vpop.f32.mrb[0].mxu0
  %v453 = vpop.f32.mrb[0].mxu0
  %v454 = vadd.f32 0.0, %v453
  %v455 = vpop.f32.mrb[0].mxu0
  %456 = vmatprep.mubr.bf16.mxu0 %v221
  %457 = vmatmul.mubr.bf16.gmra.mrb[0].mxu0 %v220
  %v458 = vpop.f32.mrb[0].mxu0
  %v459 = vadd.f32 0.0, %v458
  %v460 = vpop.f32.mrb[0].mxu0
  %v461 = vpop.f32.mrb[0].mxu0
  %v462 = vadd.f32 0.0, %v461
  %v463 = vpop.f32.mrb[0].mxu0
  %464 = vmatprep.mubr.bf16.mxu0 %v223
  %465 = vmatmul.mubr.bf16.gmra.mrb[0].mxu0 %v222
  %v466 = vpop.f32.mrb[0].mxu0
  %v467 = vadd.f32 0.0, %v466
  %v468 = vpop.f32.mrb[0].mxu0
  %v469 = vpop.f32.mrb[0].mxu0
  %v470 = vadd.f32 0.0, %v469
  %v471 = vpop.f32.mrb[0].mxu0
  %472 = vdwg.mxu0
  %v473 = vadd.f32 %v80, %v379
  %v474 = vadd.f32 %v81, %v382
  %v475 = vadd.f32 %v82, %v387
  %v476 = vadd.f32 %v83, %v390
  %v477 = vadd.f32 %v84, %v395
  %v478 = vadd.f32 %v85, %v398
  %v479 = vadd.f32 %v86, %v403
  %v480 = vadd.f32 %v87, %v406
  %v481 = vadd.f32 %v88, %v411
  %v482 = vadd.f32 %v89, %v414
  %v483 = vadd.f32 %v90, %v419
  %v484 = vadd.f32 %v91, %v422
  %v485 = vadd.f32 %v92, %v427
  %v486 = vadd.f32 %v93, %v430
  %v487 = vadd.f32 %v94, %v435
  %v488 = vadd.f32 %v95, %v438
  %v489 = vadd.f32 %v96, %v443
  %v490 = vadd.f32 %v97, %v446
  %v491 = vadd.f32 %v98, %v451
  %v492 = vadd.f32 %v99, %v454
  %v493 = vadd.f32 %v100, %v459
  %v494 = vadd.f32 %v101, %v462
  %v495 = vadd.f32 %v102, %v467
  %v496 = vadd.f32 %v103, %v470
  %497 = vst [vmem:[#allocation2] sm:$0xff] %v473
  %498 = vst [vmem:[#allocation2 + $0x8] sm:$0xff] %v474
  %499 = vst [vmem:[#allocation2 + $0x10] sm:$0xff] %v475
  %500 = vst [vmem:[#allocation2 + $0x18] sm:$0xff] %v476
  %501 = vst [vmem:[#allocation2 + $0x20] sm:$0xff] %v477
  %502 = vst [vmem:[#allocation2 + $0x28] sm:$0xff] %v478
  %503 = vst [vmem:[#allocation2 + $0x30] sm:$0xff] %v479
  %504 = vst [vmem:[#allocation2 + $0x38] sm:$0xff] %v480
  %505 = vst [vmem:[#allocation2 + $0x40] sm:$0xff] %v481
  %506 = vst [vmem:[#allocation2 + $0x48] sm:$0xff] %v482
  %507 = vst [vmem:[#allocation2 + $0x50] sm:$0xff] %v483
  %508 = vst [vmem:[#allocation2 + $0x58] sm:$0xff] %v484
  %509 = vst [vmem:[#allocation2 + $0x60] sm:$0xff] %v485
  %510 = vst [vmem:[#allocation2 + $0x68] sm:$0xff] %v486
  %511 = vst [vmem:[#allocation2 + $0x70] sm:$0xff] %v487
  %512 = vst [vmem:[#allocation2 + $0x78] sm:$0xff] %v488
  %513 = vst [vmem:[#allocation2 + $0x80] sm:$0xff] %v489
  %514 = vst [vmem:[#allocation2 + $0x88] sm:$0xff] %v490
  %515 = vst [vmem:[#allocation2 + $0x90] sm:$0xff] %v491
  %516 = vst [vmem:[#allocation2 + $0x98] sm:$0xff] %v492
  %517 = vst [vmem:[#allocation2 + $0xa0] sm:$0xff] %v493
  %518 = vst [vmem:[#allocation2 + $0xa8] sm:$0xff] %v494
  %519 = vst [vmem:[#allocation2 + $0xb0] sm:$0xff] %v495
  %520 = vst [vmem:[#allocation2 + $0xb8] sm:$0xff] %v496
  // Predicated region
  $region18: #{stc_connector_forward.2} parent=0 // pred_check
    %p521 = pneg %p15
  $region19: #{stc_connector_forward.2} parent=0 // pred_check_branch
    %523 = sbr.rel (%p521) target = $region21
  $region20: #{stc_connector_forward.2} parent=0 // pred_region
    %v524 = vld [vmem:[#allocation2] sm:$0xff]
    %v525 = vld [vmem:[#allocation2 + $0x8] sm:$0xff]
    %v526 = vld [vmem:[#allocation2 + $0x10] sm:$0xff]
    %v527 = vld [vmem:[#allocation2 + $0x18] sm:$0xff]
    %v528 = vld [vmem:[#allocation2 + $0x20] sm:$0xff]
    %v529 = vld [vmem:[#allocation2 + $0x28] sm:$0xff]
    %v530 = vld [vmem:[#allocation2 + $0x30] sm:$0xff]
    %v531 = vld [vmem:[#allocation2 + $0x38] sm:$0xff]
    %v532 = vld [vmem:[#allocation2 + $0x40] sm:$0xff]
    %v533 = vld [vmem:[#allocation2 + $0x48] sm:$0xff]
    %v534 = vld [vmem:[#allocation2 + $0x50] sm:$0xff]
    %v535 = vld [vmem:[#allocation2 + $0x58] sm:$0xff]
    %v536 = vld [vmem:[#allocation2 + $0x60] sm:$0xff]
    %v537 = vld [vmem:[#allocation2 + $0x68] sm:$0xff]
    %v538 = vld [vmem:[#allocation2 + $0x70] sm:$0xff]
    %v539 = vld [vmem:[#allocation2 + $0x78] sm:$0xff]
    %v540 = vld [vmem:[#allocation2 + $0x80] sm:$0xff]
    %v541 = vld [vmem:[#allocation2 + $0x88] sm:$0xff]
    %v542 = vld [vmem:[#allocation2 + $0x90] sm:$0xff]
    %v543 = vld [vmem:[#allocation2 + $0x98] sm:$0xff]
    %v544 = vld [vmem:[#allocation2 + $0xa0] sm:$0xff]
    %v545 = vld [vmem:[#allocation2 + $0xa8] sm:$0xff]
    %v546 = vld [vmem:[#allocation2 + $0xb0] sm:$0xff]
    %v547 = vld [vmem:[#allocation2 + $0xb8] sm:$0xff]
    %v548 = vld [vmem:[%s2] sm:$0x1]
    %v550 = vlaneseq
    %v551 = vshrl.u32 %v550, 7
    %v552 = vsub.s32 0, %v551
    %v553 = vrot.slane %v548, %v552
    %v555 = vadd.f32 %v524, %v553
    %v556 = vadd.f32 %v525, %v553
    %v557 = vadd.f32 %v526, %v553
    %v558 = vadd.f32 %v527, %v553
    %v559 = vadd.f32 %v528, %v553
    %v560 = vadd.f32 %v529, %v553
    %v561 = vadd.f32 %v530, %v553
    %v562 = vadd.f32 %v531, %v553
    %v563 = vadd.f32 %v532, %v553
    %v564 = vadd.f32 %v533, %v553
    %v565 = vadd.f32 %v534, %v553
    %v566 = vadd.f32 %v535, %v553
    %v567 = vadd.f32 %v536, %v553
    %v568 = vadd.f32 %v537, %v553
    %v569 = vadd.f32 %v538, %v553
    %v570 = vadd.f32 %v539, %v553
    %v571 = vadd.f32 %v540, %v553
    %v572 = vadd.f32 %v541, %v553
    %v573 = vadd.f32 %v542, %v553
    %v574 = vadd.f32 %v543, %v553
    %v575 = vadd.f32 %v544, %v553
    %v576 = vadd.f32 %v545, %v553
    %v577 = vadd.f32 %v546, %v553
    %v578 = vadd.f32 %v547, %v553
    %v579 = vxor.u32 %v555, 2147483648
    %v580 = vxor.u32 %v556, 2147483648
    %v581 = vxor.u32 %v557, 2147483648
    %v582 = vxor.u32 %v558, 2147483648
    %v583 = vxor.u32 %v559, 2147483648
    %v584 = vxor.u32 %v560, 2147483648
    %v585 = vxor.u32 %v561, 2147483648
    %v586 = vxor.u32 %v562, 2147483648
    %v587 = vxor.u32 %v563, 2147483648
    %v588 = vxor.u32 %v564, 2147483648
    %v589 = vxor.u32 %v565, 2147483648
    %v590 = vxor.u32 %v566, 2147483648
    %v591 = vxor.u32 %v567, 2147483648
    %v592 = vxor.u32 %v568, 2147483648
    %v593 = vxor.u32 %v569, 2147483648
    %v594 = vxor.u32 %v570, 2147483648
    %v595 = vxor.u32 %v571, 2147483648
    %v596 = vxor.u32 %v572, 2147483648
    %v597 = vxor.u32 %v573, 2147483648
    %v598 = vxor.u32 %v574, 2147483648
    %v599 = vxor.u32 %v575, 2147483648
    %v600 = vxor.u32 %v576, 2147483648
    %v601 = vxor.u32 %v577, 2147483648
    %v602 = vxor.u32 %v578, 2147483648
    %v603 = vmul.f32 %v579, 1.442695
    %v604 = vpow.pop %v603
    %v605 = vmul.f32 %v580, 1.442695
    %v606 = vpow.pop %v605
    %v607 = vmul.f32 %v581, 1.442695
    %v608 = vpow.pop %v607
    %v609 = vmul.f32 %v582, 1.442695
    %v610 = vpow.pop %v609
    %v611 = vmul.f32 %v583, 1.442695
    %v612 = vpow.pop %v611
    %v613 = vmul.f32 %v584, 1.442695
    %v614 = vpow.pop %v613
    %v615 = vmul.f32 %v585, 1.442695
    %v616 = vpow.pop %v615
    %v617 = vmul.f32 %v586, 1.442695
    %v618 = vpow.pop %v617
    %v619 = vmul.f32 %v587, 1.442695
    %v620 = vpow.pop %v619
    %v621 = vmul.f32 %v588, 1.442695
    %v622 = vpow.pop %v621
    %v623 = vmul.f32 %v589, 1.442695
    %v624 = vpow.pop %v623
    %v625 = vmul.f32 %v590, 1.442695
    %v626 = vpow.pop %v625
    %v627 = vmul.f32 %v591, 1.442695
    %v628 = vpow.pop %v627
    %v629 = vmul.f32 %v592, 1.442695
    %v630 = vpow.pop %v629
    %v631 = vmul.f32 %v593, 1.442695
    %v632 = vpow.pop %v631
    %v633 = vmul.f32 %v594, 1.442695
    %v634 = vpow.pop %v633
    %v635 = vmul.f32 %v595, 1.442695
    %v636 = vpow.pop %v635
    %v637 = vmul.f32 %v596, 1.442695
    %v638 = vpow.pop %v637
    %v639 = vmul.f32 %v597, 1.442695
    %v640 = vpow.pop %v639
    %v641 = vmul.f32 %v598, 1.442695
    %v642 = vpow.pop %v641
    %v643 = vmul.f32 %v599, 1.442695
    %v644 = vpow.pop %v643
    %v645 = vmul.f32 %v600, 1.442695
    %v646 = vpow.pop %v645
    %v647 = vmul.f32 %v601, 1.442695
    %v648 = vpow.pop %v647
    %v649 = vmul.f32 %v602, 1.442695
    %v650 = vpow.pop %v649
    %v651 = vadd.f32 %v604, 1.0
    %v652 = vadd.f32 %v606, 1.0
    %v653 = vadd.f32 %v608, 1.0
    %v654 = vadd.f32 %v610, 1.0
    %v655 = vadd.f32 %v612, 1.0
    %v656 = vadd.f32 %v614, 1.0
    %v657 = vadd.f32 %v616, 1.0
    %v658 = vadd.f32 %v618, 1.0
    %v659 = vadd.f32 %v620, 1.0
    %v660 = vadd.f32 %v622, 1.0
    %v661 = vadd.f32 %v624, 1.0
    %v662 = vadd.f32 %v626, 1.0
    %v663 = vadd.f32 %v628, 1.0
    %v664 = vadd.f32 %v630, 1.0
    %v665 = vadd.f32 %v632, 1.0
    %v666 = vadd.f32 %v634, 1.0
    %v667 = vadd.f32 %v636, 1.0
    %v668 = vadd.f32 %v638, 1.0
    %v669 = vadd.f32 %v640, 1.0
    %v670 = vadd.f32 %v642, 1.0
    %v671 = vadd.f32 %v644, 1.0
    %v672 = vadd.f32 %v646, 1.0
    %v673 = vadd.f32 %v648, 1.0
    %v674 = vadd.f32 %v650, 1.0
    %v675 = vrcp.pop %v651
    %v676 = vmul.f32 1.0, %v675
    %v677 = vrcp.pop %v652
    %v678 = vmul.f32 1.0, %v677
    %v679 = vrcp.pop %v653
    %v680 = vmul.f32 1.0, %v679
    %v681 = vrcp.pop %v654
    %v682 = vmul.f32 1.0, %v681
    %v683 = vrcp.pop %v655
    %v684 = vmul.f32 1.0, %v683
    %v685 = vrcp.pop %v656
    %v686 = vmul.f32 1.0, %v685
    %v687 = vrcp.pop %v657
    %v688 = vmul.f32 1.0, %v687
    %v689 = vrcp.pop %v658
    %v690 = vmul.f32 1.0, %v689
    %v691 = vrcp.pop %v659
    %v692 = vmul.f32 1.0, %v691
    %v693 = vrcp.pop %v660
    %v694 = vmul.f32 1.0, %v693
    %v695 = vrcp.pop %v661
    %v696 = vmul.f32 1.0, %v695
    %v697 = vrcp.pop %v662
    %v698 = vmul.f32 1.0, %v697
    %v699 = vrcp.pop %v663
    %v700 = vmul.f32 1.0, %v699
    %v701 = vrcp.pop %v664
    %v702 = vmul.f32 1.0, %v701
    %v703 = vrcp.pop %v665
    %v704 = vmul.f32 1.0, %v703
    %v705 = vrcp.pop %v666
    %v706 = vmul.f32 1.0, %v705
    %v707 = vrcp.pop %v667
    %v708 = vmul.f32 1.0, %v707
    %v709 = vrcp.pop %v668
    %v710 = vmul.f32 1.0, %v709
    %v711 = vrcp.pop %v669
    %v712 = vmul.f32 1.0, %v711
    %v713 = vrcp.pop %v670
    %v714 = vmul.f32 1.0, %v713
    %v715 = vrcp.pop %v671
    %v716 = vmul.f32 1.0, %v715
    %v717 = vrcp.pop %v672
    %v718 = vmul.f32 1.0, %v717
    %v719 = vrcp.pop %v673
    %v720 = vmul.f32 1.0, %v719
    %v721 = vrcp.pop %v674
    %v722 = vmul.f32 1.0, %v721
    %v723 = vmul.f32 %v555, %v676
    %v724 = vmul.f32 %v556, %v678
    %v725 = vmul.f32 %v557, %v680
    %v726 = vmul.f32 %v558, %v682
    %v727 = vmul.f32 %v559, %v684
    %v728 = vmul.f32 %v560, %v686
    %v729 = vmul.f32 %v561, %v688
    %v730 = vmul.f32 %v562, %v690
    %v731 = vmul.f32 %v563, %v692
    %v732 = vmul.f32 %v564, %v694
    %v733 = vmul.f32 %v565, %v696
    %v734 = vmul.f32 %v566, %v698
    %v735 = vmul.f32 %v567, %v700
    %v736 = vmul.f32 %v568, %v702
    %v737 = vmul.f32 %v569, %v704
    %v738 = vmul.f32 %v570, %v706
    %v739 = vmul.f32 %v571, %v708
    %v740 = vmul.f32 %v572, %v710
    %v741 = vmul.f32 %v573, %v712
    %v742 = vmul.f32 %v574, %v714
    %v743 = vmul.f32 %v575, %v716
    %v744 = vmul.f32 %v576, %v718
    %v745 = vmul.f32 %v577, %v720
    %v746 = vmul.f32 %v578, %v722
    %v747 = vlaneseq
    %v748 = vshrl.u32 %v747, 7
    %v749 = vadd.s32 %v748, 8
    %v750 = vadd.s32 %v748, 16
    %v751 = vadd.s32 %v748, 24
    %vm752 = vcmp.lt.s32.totalorder %v748, 25
    %vm753 = vcmp.lt.s32.totalorder %v749, 25
    %vm754 = vcmp.lt.s32.totalorder %v750, 25
    %vm755 = vcmp.lt.s32.totalorder %v751, 25
    %v756 = vsel %vm752, %v723, -3.4028235e+38
    %v757 = vsel %vm753, %v724, -3.4028235e+38
    %v758 = vsel %vm754, %v725, -3.4028235e+38
    %v759 = vsel %vm755, %v726, -3.4028235e+38
    %v760 = vsel %vm752, %v727, -3.4028235e+38
    %v761 = vsel %vm753, %v728, -3.4028235e+38
    %v762 = vsel %vm754, %v729, -3.4028235e+38
    %v763 = vsel %vm755, %v730, -3.4028235e+38
    %v764 = vsel %vm752, %v731, -3.4028235e+38
    %v765 = vsel %vm753, %v732, -3.4028235e+38
    %v766 = vsel %vm754, %v733, -3.4028235e+38
    %v767 = vsel %vm755, %v734, -3.4028235e+38
    %v768 = vsel %vm752, %v735, -3.4028235e+38
    %v769 = vsel %vm753, %v736, -3.4028235e+38
    %v770 = vsel %vm754, %v737, -3.4028235e+38
    %v771 = vsel %vm755, %v738, -3.4028235e+38
    %v772 = vsel %vm752, %v739, -3.4028235e+38
    %v773 = vsel %vm753, %v740, -3.4028235e+38
    %v774 = vsel %vm754, %v741, -3.4028235e+38
    %v775 = vsel %vm755, %v742, -3.4028235e+38
    %v776 = vsel %vm752, %v743, -3.4028235e+38
    %v777 = vsel %vm753, %v744, -3.4028235e+38
    %v778 = vsel %vm754, %v745, -3.4028235e+38
    %v779 = vsel %vm755, %v746, -3.4028235e+38
    %v780 = vmax.f32 %v756, %v757
    %v781 = vmax.f32 %v780, %v758
    %v782 = vmax.f32 %v781, %v759
    %v783 = vrot.slane %v782, 4
    %v784 = vmax.f32 %v782, %v783
    %v785 = vrot.slane %v784, 2
    %v786 = vmax.f32 %v784, %v785
    %v787 = vrot.slane %v786, 1
    %v788 = vmax.f32 %v786, %v787
    %v789 = vmax.f32 %v760, %v761
    %v790 = vmax.f32 %v789, %v762
    %v791 = vmax.f32 %v790, %v763
    %v792 = vrot.slane %v791, 4
    %v793 = vmax.f32 %v791, %v792
    %v794 = vrot.slane %v793, 2
    %v795 = vmax.f32 %v793, %v794
    %v796 = vrot.slane %v795, 1
    %v797 = vmax.f32 %v795, %v796
    %v798 = vmax.f32 %v764, %v765
    %v799 = vmax.f32 %v798, %v766
    %v800 = vmax.f32 %v799, %v767
    %v801 = vrot.slane %v800, 4
    %v802 = vmax.f32 %v800, %v801
    %v803 = vrot.slane %v802, 2
    %v804 = vmax.f32 %v802, %v803
    %v805 = vrot.slane %v804, 1
    %v806 = vmax.f32 %v804, %v805
    %v807 = vmax.f32 %v768, %v769
    %v808 = vmax.f32 %v807, %v770
    %v809 = vmax.f32 %v808, %v771
    %v810 = vrot.slane %v809, 4
    %v811 = vmax.f32 %v809, %v810
    %v812 = vrot.slane %v811, 2
    %v813 = vmax.f32 %v811, %v812
    %v814 = vrot.slane %v813, 1
    %v815 = vmax.f32 %v813, %v814
    %v816 = vmax.f32 %v772, %v773
    %v817 = vmax.f32 %v816, %v774
    %v818 = vmax.f32 %v817, %v775
    %v819 = vrot.slane %v818, 4
    %v820 = vmax.f32 %v818, %v819
    %v821 = vrot.slane %v820, 2
    %v822 = vmax.f32 %v820, %v821
    %v823 = vrot.slane %v822, 1
    %v824 = vmax.f32 %v822, %v823
    %v825 = vmax.f32 %v776, %v777
    %v826 = vmax.f32 %v825, %v778
    %v827 = vmax.f32 %v826, %v779
    %v828 = vrot.slane %v827, 4
    %v829 = vmax.f32 %v827, %v828
    %v830 = vrot.slane %v829, 2
    %v831 = vmax.f32 %v829, %v830
    %v832 = vrot.slane %v831, 1
    %v833 = vmax.f32 %v831, %v832
    %vm840 = vcmask 1041409
    %v841 = vsel %vm840, %v797, %v788
    %vm842 = vcmask 1042434
    %v843 = vsel %vm842, %v806, %v841
    %vm844 = vcmask 1043459
    %v845 = vsel %vm844, %v815, %v843
    %vm846 = vcmask 1044484
    %v847 = vsel %vm846, %v824, %v845
    %vm848 = vcmask 1045509
    %v849 = vsel %vm848, %v833, %v847
    %851 = vst [vmem:[%s3] sm:$0x3f] %v849
  $region21: #{stc_connector_forward.2} parent=0 // pred_fallthru
    _
  // Predicated region
  $region22: #{stc_connector_forward.2} parent=0 // pred_check
    _
  $region23: #{stc_connector_forward.2} parent=0 // pred_check_branch
    %853 = sbr.rel (0) target = $region25
  $region24: #{stc_connector_forward.2} parent=0 // pred_region
    _
  $region25: #{stc_connector_forward.2} parent=0 // pred_fallthru
    _
  // Predicated region
  $region26: #{stc_connector_forward.2} parent=0 // pred_check
    _
  $region27: #{stc_connector_forward.2} parent=0 // pred_check_branch
    %855 = sbr.rel (0) target = $region29
  $region28: #{stc_connector_forward.2} parent=0 // pred_region
    _
  $region29: #{stc_connector_forward.2} parent=0 // pred_fallthru
    _

</llo_original>
